<compile_context>
chip_gen: v5e
topology: v5e:2x2
jax: 0.10.0
libtpu: 0.0.40
codegen_flags: <defaults>
</compile_context>

<pallas_src>
import math
import jax
import jax.numpy as jnp
from jax.experimental import pallas as pl
from jax.experimental.pallas import tpu as pltpu


NEG_MASK = -1e30  # finite large-negative causal mask (robust vs. fully-masked rows)


def make_block_kernel(T, C, H):
    hs = C // H
    inv_sqrt_hs = 1.0 / math.sqrt(hs)
    EPS = 1e-5

    def layernorm(x, g, b):
        mu = jnp.mean(x, axis=-1, keepdims=True)
        xc = x - mu
        var = jnp.mean(xc * xc, axis=-1, keepdims=True)
        return xc * jax.lax.rsqrt(var + EPS) * g + b

    def gelu_tanh(x):
        # GELU(approximate='tanh'), f32
        c = math.sqrt(2.0 / math.pi)
        return 0.5 * x * (1.0 + jnp.tanh(c * (x + 0.044715 * x * x * x)))

    def kernel(x_ref,
               ln1_g_ref, ln1_b_ref,
               w_attn_ref, b_attn_ref,
               w_proj_ref, b_proj_ref,
               ln2_g_ref, ln2_b_ref,
               w_fc_ref, b_fc_ref,
               w_fc2_ref, b_fc2_ref,
               out_ref,
               qkv_heads_ref, acc_ref):
        x = x_ref[0]                                                   # (T, C) f32

        # ---- attention branch -------------------------------------------
        h1 = layernorm(x, ln1_g_ref[...], ln1_b_ref[...])             # f32
        qkv = jnp.dot(h1.astype(jnp.bfloat16), w_attn_ref[...],
                      preferred_element_type=jnp.float32) + b_attn_ref[...]
        qkv_bf = qkv.astype(jnp.bfloat16)                              # (T, 3C)

        # Stage QKV head-major: slot s <-> columns [s*hs, (s+1)*hs).  Static lane
        # slices here; the fori_loop below then only needs leading-dim dynamic
        # indexing (no dynamic lane slicing, no reshapes/transposes).
        for s in range(3 * H):                                         # copies only
            qkv_heads_ref[s] = qkv_bf[:, s * hs:(s + 1) * hs]

        # In-kernel additive causal mask (no resident (T, T) HBM block).
        row = jax.lax.broadcasted_iota(jnp.int32, (T, T), 0)
        col = jax.lax.broadcasted_iota(jnp.int32, (T, T), 1)
        bias = jnp.where(col <= row, 0.0, NEG_MASK).astype(jnp.float32)

        # Per-head attention, liveness bounded to one head's (T, T) tensors.
        # Each head's PV result is folded straight into the output projection:
        #   sum_h (p_h v_h) @ w_proj[h*hs:(h+1)*hs, :]  ==  concat_h(p_h v_h) @ w_proj
        acc_ref[...] = jnp.zeros_like(acc_ref)                         # (T, C) f32

        def head_body(h, carry):
            qh = qkv_heads_ref[h]                                      # (T, hs) bf16
            kh = qkv_heads_ref[H + h]
            vh = qkv_heads_ref[2 * H + h]
            # q . k^T via contraction dims (no materialized transpose).
            s = jax.lax.dot_general(qh, kh, (((1,), (1,)), ((), ())),
                                    preferred_element_type=jnp.float32)  # (T, T)
            s = s * inv_sqrt_hs + bias
            m = jnp.max(s, axis=-1, keepdims=True)
            e = jnp.exp(s - m)                                         # f32
            denom = jnp.sum(e, axis=-1, keepdims=True)
            p = (e * pl.reciprocal(denom, approx=True)).astype(jnp.bfloat16)
            yh = jnp.dot(p, vh, preferred_element_type=jnp.float32)    # (T, hs) f32
            off = pl.multiple_of(h * hs, hs)
            wp = w_proj_ref[pl.ds(off, hs), :]                         # (hs, C) bf16
            acc_ref[...] += jnp.dot(yh.astype(jnp.bfloat16), wp,
                                    preferred_element_type=jnp.float32)
            return carry

        jax.lax.fori_loop(0, H, head_body, 0)

        y = acc_ref[...] + b_proj_ref[...]                             # (T, C) f32
        x = x + y                                                      # residual

        # ---- MLP branch --------------------------------------------------
        h2 = layernorm(x, ln2_g_ref[...], ln2_b_ref[...])
        f = jnp.dot(h2.astype(jnp.bfloat16), w_fc_ref[...],
                    preferred_element_type=jnp.float32) + b_fc_ref[...]
        f = gelu_tanh(f)                                               # f32
        f = jnp.dot(f.astype(jnp.bfloat16), w_fc2_ref[...],
                    preferred_element_type=jnp.float32) + b_fc2_ref[...]
        out_ref[0] = x + f

    return kernel


def block_forward(x, params, n_head):
    B, T, C = x.shape
    hs = C // n_head
    kernel = make_block_kernel(T, C, n_head)

    # Weight matrices to bf16 once (MXU-native, halves resident VMEM);
    # biases and layernorm params stay f32.
    bf = jnp.bfloat16
    args = {
        'ln1_g': params['ln1_g'], 'ln1_b': params['ln1_b'],
        'w_attn': params['w_attn'].astype(bf), 'b_attn': params['b_attn'],
        'w_proj': params['w_proj'].astype(bf), 'b_proj': params['b_proj'],
        'ln2_g': params['ln2_g'], 'ln2_b': params['ln2_b'],
        'w_fc': params['w_fc'].astype(bf), 'b_fc': params['b_fc'],
        'w_fc2': params['w_fc2'].astype(bf), 'b_fc2': params['b_fc2'],
    }
    param_order = ['ln1_g', 'ln1_b', 'w_attn', 'b_attn', 'w_proj', 'b_proj',
                   'ln2_g', 'ln2_b', 'w_fc', 'b_fc', 'w_fc2', 'b_fc2']

    def const_spec(shape):
        # Constant index_map -> nothing to prefetch; single-buffer to halve VMEM.
        nd = len(shape)
        return pl.BlockSpec(shape, lambda b: (0,) * nd,
                            pipeline_mode=pl.Buffered(1))

    in_specs = [pl.BlockSpec((1, T, C), lambda b: (b, 0, 0))]   # x, tiled over batch
    in_specs += [const_spec(args[n].shape) for n in param_order]
    out_spec = pl.BlockSpec((1, T, C), lambda b: (b, 0, 0))

    # Per-generation VMEM ceiling (with headroom): ~112 MiB on v5e/v6e (128 MiB
    # physical), ~56 MiB on v7x (64 MiB physical).
    try:
        vmem_cap = pltpu.get_tpu_info().vmem_capacity_bytes
    except Exception:
        vmem_cap = 64 * 1024 * 1024
    vmem_limit = int(min((vmem_cap * 7) // 8, 112 * 1024 * 1024))

    scratch_shapes = [
        pltpu.VMEM((3 * n_head, T, hs), jnp.bfloat16),   # head-major QKV staging
        pltpu.VMEM((T, C), jnp.float32),                 # lane-dense proj accumulator
    ]

    fn = pl.pallas_call(
        kernel,
        out_shape=jax.ShapeDtypeStruct((B, T, C), jnp.float32),
        grid_spec=pltpu.PrefetchScalarGridSpec(
            num_scalar_prefetch=0,
            grid=(B,),
            in_specs=in_specs,
            out_specs=out_spec,
            scratch_shapes=scratch_shapes,
        ),
        compiler_params=pltpu.CompilerParams(
            dimension_semantics=("parallel",),
            vmem_limit_bytes=vmem_limit,
        ),
    )
    return fn(x, *[args[n] for n in param_order])


def block_reference(x, p, n_head):
    # Pure-JAX f32 reference matching the PyTorch Block forward.
    B, T, C = x.shape
    hs = C // n_head

    def ln(z, g, b):
        mu = z.mean(-1, keepdims=True)
        var = ((z - mu) ** 2).mean(-1, keepdims=True)
        return (z - mu) / jnp.sqrt(var + 1e-5) * g + b

    h1 = ln(x, p['ln1_g'], p['ln1_b'])
    qkv = h1 @ p['w_attn'] + p['b_attn']
    q, k, v = jnp.split(qkv, 3, axis=-1)
    q = q.reshape(B, T, n_head, hs).transpose(0, 2, 1, 3)
    k = k.reshape(B, T, n_head, hs).transpose(0, 2, 1, 3)
    v = v.reshape(B, T, n_head, hs).transpose(0, 2, 1, 3)
    att = (q @ k.transpose(0, 1, 3, 2)) / math.sqrt(hs)
    mask = jnp.tril(jnp.ones((T, T), bool))
    att = jnp.where(mask[None, None], att, -jnp.inf)
    att = jax.nn.softmax(att, axis=-1)
    y = (att @ v).transpose(0, 2, 1, 3).reshape(B, T, C)
    y = y @ p['w_proj'] + p['b_proj']
    x = x + y
    h2 = ln(x, p['ln2_g'], p['ln2_b'])
    f = h2 @ p['w_fc'] + p['b_fc']
    c = math.sqrt(2.0 / math.pi)
    f = 0.5 * f * (1.0 + jnp.tanh(c * (f + 0.044715 * f ** 3)))
    f = f @ p['w_fc2'] + p['b_fc2']
    return x + f


def init_params(key, C):
    ks = jax.random.split(key, 8)
    s = 0.02
    params = {
        'ln1_g': jnp.ones((1, C), jnp.float32),
        'ln1_b': jnp.zeros((1, C), jnp.float32),
        'w_attn': s * jax.random.normal(ks[0], (C, 3 * C), jnp.float32),
        'b_attn': jnp.zeros((1, 3 * C), jnp.float32),
        'w_proj': s * jax.random.normal(ks[1], (C, C), jnp.float32),
        'b_proj': jnp.zeros((1, C), jnp.float32),
        'ln2_g': jnp.ones((1, C), jnp.float32),
        'ln2_b': jnp.zeros((1, C), jnp.float32),
        'w_fc': s * jax.random.normal(ks[2], (C, 4 * C), jnp.float32),
        'b_fc': jnp.zeros((1, 4 * C), jnp.float32),
        'w_fc2': s * jax.random.normal(ks[3], (4 * C, C), jnp.float32),
        'b_fc2': jnp.zeros((1, C), jnp.float32),
    }
    return params


if __name__ == "__main__":
    B, T, C, H = 2, 8, 32, 4
    key = jax.random.PRNGKey(0)
    kx, kp = jax.random.split(key)
    x = jax.random.normal(kx, (B, T, C), jnp.float32)
    params = init_params(kp, C)

    out = block_forward(x, params, n_head=H)
    out = jax.block_until_ready(out)
    assert out.shape == (B, T, C)
    assert jnp.all(jnp.isfinite(out))

    # Loose tolerance: bf16 MXU matmuls + approx-reciprocal softmax vs f32 reference.
    ref = block_reference(x, params, H)
    assert jnp.allclose(out, ref, atol=5e-2, rtol=5e-2)
    print("KERNEL_OK")
</pallas_src>

<mosaic_0001>
module attributes {stable_mosaic.version = 11 : i64} {
  func.func @kernel(%arg0: i32, %arg1: memref<1x8x32xf32, #tpu.memory_space<vmem>>, %arg2: memref<1x32xf32, #tpu.memory_space<vmem>>, %arg3: memref<1x32xf32, #tpu.memory_space<vmem>>, %arg4: memref<32x96xbf16, #tpu.memory_space<vmem>>, %arg5: memref<1x96xf32, #tpu.memory_space<vmem>>, %arg6: memref<32x32xbf16, #tpu.memory_space<vmem>>, %arg7: memref<1x32xf32, #tpu.memory_space<vmem>>, %arg8: memref<1x32xf32, #tpu.memory_space<vmem>>, %arg9: memref<1x32xf32, #tpu.memory_space<vmem>>, %arg10: memref<32x128xbf16, #tpu.memory_space<vmem>>, %arg11: memref<1x128xf32, #tpu.memory_space<vmem>>, %arg12: memref<128x32xbf16, #tpu.memory_space<vmem>>, %arg13: memref<1x32xf32, #tpu.memory_space<vmem>>, %arg14: memref<1x8x32xf32, #tpu.memory_space<vmem>>, %arg15: memref<12x8x8xbf16, #tpu.memory_space<vmem>>, %arg16: memref<8x32xf32, #tpu.memory_space<vmem>>) attributes {dimension_semantics = [#tpu.dimension_semantics<parallel>], iteration_bounds = array<i64: 2>, scalar_prefetch = 0 : i64, scratch_operands = 2 : i64, tpu.core_type = #tpu.core_type<tc>, window_params = [{transform_indices = @transform_0, window_bounds = array<i64: 1, 8, 32>}, {pipeline_mode = #tpu.pipeline_mode<synchronous>, transform_indices = @transform_1, window_bounds = array<i64: 1, 32>}, {pipeline_mode = #tpu.pipeline_mode<synchronous>, transform_indices = @transform_2, window_bounds = array<i64: 1, 32>}, {pipeline_mode = #tpu.pipeline_mode<synchronous>, transform_indices = @transform_3, window_bounds = array<i64: 32, 96>}, {pipeline_mode = #tpu.pipeline_mode<synchronous>, transform_indices = @transform_4, window_bounds = array<i64: 1, 96>}, {pipeline_mode = #tpu.pipeline_mode<synchronous>, transform_indices = @transform_5, window_bounds = array<i64: 32, 32>}, {pipeline_mode = #tpu.pipeline_mode<synchronous>, transform_indices = @transform_6, window_bounds = array<i64: 1, 32>}, {pipeline_mode = #tpu.pipeline_mode<synchronous>, transform_indices = @transform_7, window_bounds = array<i64: 1, 32>}, {pipeline_mode = #tpu.pipeline_mode<synchronous>, transform_indices = @transform_8, window_bounds = array<i64: 1, 32>}, {pipeline_mode = #tpu.pipeline_mode<synchronous>, transform_indices = @transform_9, window_bounds = array<i64: 32, 128>}, {pipeline_mode = #tpu.pipeline_mode<synchronous>, transform_indices = @transform_10, window_bounds = array<i64: 1, 128>}, {pipeline_mode = #tpu.pipeline_mode<synchronous>, transform_indices = @transform_11, window_bounds = array<i64: 128, 32>}, {pipeline_mode = #tpu.pipeline_mode<synchronous>, transform_indices = @transform_12, window_bounds = array<i64: 1, 32>}, {transform_indices = @transform_13, window_bounds = array<i64: 1, 8, 32>}]} {
    %c0 = arith.constant 0 : index
    %c0_0 = arith.constant 0 : index
    %c0_1 = arith.constant 0 : index
    %0 = vector.load %arg1[%c0, %c0_0, %c0_1] : memref<1x8x32xf32, #tpu.memory_space<vmem>>, vector<1x8x32xf32>
    %1 = vector.shape_cast %0 : vector<1x8x32xf32> to vector<8x32xf32>
    %c0_2 = arith.constant 0 : index
    %c0_3 = arith.constant 0 : index
    %2 = vector.load %arg2[%c0_2, %c0_3] : memref<1x32xf32, #tpu.memory_space<vmem>>, vector<1x32xf32>
    %c0_4 = arith.constant 0 : index
    %c0_5 = arith.constant 0 : index
    %3 = vector.load %arg3[%c0_4, %c0_5] : memref<1x32xf32, #tpu.memory_space<vmem>>, vector<1x32xf32>
    %cst = arith.constant dense<0.000000e+00> : vector<8xf32>
    %4 = vector.multi_reduction <add>, %1, %cst [1] : vector<8x32xf32> to vector<8xf32>
    %5 = vector.shape_cast %4 : vector<8xf32> to vector<8x1xf32>
    %cst_6 = arith.constant 3.200000e+01 : f32
    %6 = vector.broadcast %cst_6 : f32 to vector<8x1xf32>
    %7 = arith.divf %5, %6 : vector<8x1xf32>
    %8 = vector.broadcast %7 : vector<8x1xf32> to vector<8x32xf32>
    %9 = arith.subf %1, %8 : vector<8x32xf32>
    %10 = arith.mulf %9, %9 : vector<8x32xf32>
    %cst_7 = arith.constant dense<0.000000e+00> : vector<8xf32>
    %11 = vector.multi_reduction <add>, %10, %cst_7 [1] : vector<8x32xf32> to vector<8xf32>
    %12 = vector.shape_cast %11 : vector<8xf32> to vector<8x1xf32>
    %cst_8 = arith.constant 3.200000e+01 : f32
    %13 = vector.broadcast %cst_8 : f32 to vector<8x1xf32>
    %14 = arith.divf %12, %13 : vector<8x1xf32>
    %cst_9 = arith.constant 9.99999974E-6 : f32
    %15 = vector.broadcast %cst_9 : f32 to vector<8x1xf32>
    %16 = arith.addf %14, %15 : vector<8x1xf32>
    %17 = math.rsqrt %16 : vector<8x1xf32>
    %18 = vector.broadcast %17 : vector<8x1xf32> to vector<8x32xf32>
    %19 = arith.mulf %9, %18 : vector<8x32xf32>
    %20 = vector.broadcast %2 : vector<1x32xf32> to vector<8x32xf32>
    %21 = arith.mulf %19, %20 : vector<8x32xf32>
    %22 = vector.broadcast %3 : vector<1x32xf32> to vector<8x32xf32>
    %23 = arith.addf %21, %22 : vector<8x32xf32>
    %24 = arith.truncf %23 : vector<8x32xf32> to vector<8x32xbf16>
    %c0_10 = arith.constant 0 : index
    %c0_11 = arith.constant 0 : index
    %25 = vector.load %arg4[%c0_10, %c0_11] : memref<32x96xbf16, #tpu.memory_space<vmem>>, vector<32x96xbf16>
    %cst_12 = arith.constant dense<0.000000e+00> : vector<8x96xf32>
    %26 = tpu.matmul %24, %25, %cst_12 {dimension_numbers = #tpu.dot_dimension_numbers<[1], [0], [0], [1], [0, 0, 1, 1], [], []>} : vector<8x32xbf16>, vector<32x96xbf16>, vector<8x96xf32> -> vector<8x96xf32>
    %c0_13 = arith.constant 0 : index
    %c0_14 = arith.constant 0 : index
    %27 = vector.load %arg5[%c0_13, %c0_14] : memref<1x96xf32, #tpu.memory_space<vmem>>, vector<1x96xf32>
    %28 = vector.broadcast %27 : vector<1x96xf32> to vector<8x96xf32>
    %29 = arith.addf %26, %28 : vector<8x96xf32>
    %30 = arith.truncf %29 : vector<8x96xf32> to vector<8x96xbf16>
    %31 = vector.extract_strided_slice %30 {offsets = [0, 0], sizes = [8, 8], strides = [1, 1]} : vector<8x96xbf16> to vector<8x8xbf16>
    %c0_15 = arith.constant 0 : index
    %c0_16 = arith.constant 0 : index
    %c0_17 = arith.constant 0 : index
    %32 = vector.load %arg15[%c0_15, %c0_16, %c0_17] : memref<12x8x8xbf16, #tpu.memory_space<vmem>>, vector<1x8x8xbf16>
    %33 = vector.shape_cast %32 : vector<1x8x8xbf16> to vector<8x8xbf16>
    %34 = vector.shape_cast %31 : vector<8x8xbf16> to vector<1x8x8xbf16>
    tpu.vector_store %arg15[%c0_15, %c0_16, %c0_17], %34 {strides = array<i32>} : memref<12x8x8xbf16, #tpu.memory_space<vmem>>, vector<1x8x8xbf16>,
    %35 = vector.extract_strided_slice %30 {offsets = [0, 8], sizes = [8, 8], strides = [1, 1]} : vector<8x96xbf16> to vector<8x8xbf16>
    %c1 = arith.constant 1 : index
    %c0_18 = arith.constant 0 : index
    %c0_19 = arith.constant 0 : index
    %36 = vector.load %arg15[%c1, %c0_18, %c0_19] : memref<12x8x8xbf16, #tpu.memory_space<vmem>>, vector<1x8x8xbf16>
    %37 = vector.shape_cast %36 : vector<1x8x8xbf16> to vector<8x8xbf16>
    %38 = vector.shape_cast %35 : vector<8x8xbf16> to vector<1x8x8xbf16>
    tpu.vector_store %arg15[%c1, %c0_18, %c0_19], %38 {strides = array<i32>} : memref<12x8x8xbf16, #tpu.memory_space<vmem>>, vector<1x8x8xbf16>,
    %39 = vector.extract_strided_slice %30 {offsets = [0, 16], sizes = [8, 8], strides = [1, 1]} : vector<8x96xbf16> to vector<8x8xbf16>
    %c2 = arith.constant 2 : index
    %c0_20 = arith.constant 0 : index
    %c0_21 = arith.constant 0 : index
    %40 = vector.load %arg15[%c2, %c0_20, %c0_21] : memref<12x8x8xbf16, #tpu.memory_space<vmem>>, vector<1x8x8xbf16>
    %41 = vector.shape_cast %40 : vector<1x8x8xbf16> to vector<8x8xbf16>
    %42 = vector.shape_cast %39 : vector<8x8xbf16> to vector<1x8x8xbf16>
    tpu.vector_store %arg15[%c2, %c0_20, %c0_21], %42 {strides = array<i32>} : memref<12x8x8xbf16, #tpu.memory_space<vmem>>, vector<1x8x8xbf16>,
    %43 = vector.extract_strided_slice %30 {offsets = [0, 24], sizes = [8, 8], strides = [1, 1]} : vector<8x96xbf16> to vector<8x8xbf16>
    %c3 = arith.constant 3 : index
    %c0_22 = arith.constant 0 : index
    %c0_23 = arith.constant 0 : index
    %44 = vector.load %arg15[%c3, %c0_22, %c0_23] : memref<12x8x8xbf16, #tpu.memory_space<vmem>>, vector<1x8x8xbf16>
    %45 = vector.shape_cast %44 : vector<1x8x8xbf16> to vector<8x8xbf16>
    %46 = vector.shape_cast %43 : vector<8x8xbf16> to vector<1x8x8xbf16>
    tpu.vector_store %arg15[%c3, %c0_22, %c0_23], %46 {strides = array<i32>} : memref<12x8x8xbf16, #tpu.memory_space<vmem>>, vector<1x8x8xbf16>,
    %47 = vector.extract_strided_slice %30 {offsets = [0, 32], sizes = [8, 8], strides = [1, 1]} : vector<8x96xbf16> to vector<8x8xbf16>
    %c4 = arith.constant 4 : index
    %c0_24 = arith.constant 0 : index
    %c0_25 = arith.constant 0 : index
    %48 = vector.load %arg15[%c4, %c0_24, %c0_25] : memref<12x8x8xbf16, #tpu.memory_space<vmem>>, vector<1x8x8xbf16>
    %49 = vector.shape_cast %48 : vector<1x8x8xbf16> to vector<8x8xbf16>
    %50 = vector.shape_cast %47 : vector<8x8xbf16> to vector<1x8x8xbf16>
    tpu.vector_store %arg15[%c4, %c0_24, %c0_25], %50 {strides = array<i32>} : memref<12x8x8xbf16, #tpu.memory_space<vmem>>, vector<1x8x8xbf16>,
    %51 = vector.extract_strided_slice %30 {offsets = [0, 40], sizes = [8, 8], strides = [1, 1]} : vector<8x96xbf16> to vector<8x8xbf16>
    %c5 = arith.constant 5 : index
    %c0_26 = arith.constant 0 : index
    %c0_27 = arith.constant 0 : index
    %52 = vector.load %arg15[%c5, %c0_26, %c0_27] : memref<12x8x8xbf16, #tpu.memory_space<vmem>>, vector<1x8x8xbf16>
    %53 = vector.shape_cast %52 : vector<1x8x8xbf16> to vector<8x8xbf16>
    %54 = vector.shape_cast %51 : vector<8x8xbf16> to vector<1x8x8xbf16>
    tpu.vector_store %arg15[%c5, %c0_26, %c0_27], %54 {strides = array<i32>} : memref<12x8x8xbf16, #tpu.memory_space<vmem>>, vector<1x8x8xbf16>,
    %55 = vector.extract_strided_slice %30 {offsets = [0, 48], sizes = [8, 8], strides = [1, 1]} : vector<8x96xbf16> to vector<8x8xbf16>
    %c6 = arith.constant 6 : index
    %c0_28 = arith.constant 0 : index
    %c0_29 = arith.constant 0 : index
    %56 = vector.load %arg15[%c6, %c0_28, %c0_29] : memref<12x8x8xbf16, #tpu.memory_space<vmem>>, vector<1x8x8xbf16>
    %57 = vector.shape_cast %56 : vector<1x8x8xbf16> to vector<8x8xbf16>
    %58 = vector.shape_cast %55 : vector<8x8xbf16> to vector<1x8x8xbf16>
    tpu.vector_store %arg15[%c6, %c0_28, %c0_29], %58 {strides = array<i32>} : memref<12x8x8xbf16, #tpu.memory_space<vmem>>, vector<1x8x8xbf16>,
    %59 = vector.extract_strided_slice %30 {offsets = [0, 56], sizes = [8, 8], strides = [1, 1]} : vector<8x96xbf16> to vector<8x8xbf16>
    %c7 = arith.constant 7 : index
    %c0_30 = arith.constant 0 : index
    %c0_31 = arith.constant 0 : index
    %60 = vector.load %arg15[%c7, %c0_30, %c0_31] : memref<12x8x8xbf16, #tpu.memory_space<vmem>>, vector<1x8x8xbf16>
    %61 = vector.shape_cast %60 : vector<1x8x8xbf16> to vector<8x8xbf16>
    %62 = vector.shape_cast %59 : vector<8x8xbf16> to vector<1x8x8xbf16>
    tpu.vector_store %arg15[%c7, %c0_30, %c0_31], %62 {strides = array<i32>} : memref<12x8x8xbf16, #tpu.memory_space<vmem>>, vector<1x8x8xbf16>,
    %63 = vector.extract_strided_slice %30 {offsets = [0, 64], sizes = [8, 8], strides = [1, 1]} : vector<8x96xbf16> to vector<8x8xbf16>
    %c8 = arith.constant 8 : index
    %c0_32 = arith.constant 0 : index
    %c0_33 = arith.constant 0 : index
    %64 = vector.load %arg15[%c8, %c0_32, %c0_33] : memref<12x8x8xbf16, #tpu.memory_space<vmem>>, vector<1x8x8xbf16>
    %65 = vector.shape_cast %64 : vector<1x8x8xbf16> to vector<8x8xbf16>
    %66 = vector.shape_cast %63 : vector<8x8xbf16> to vector<1x8x8xbf16>
    tpu.vector_store %arg15[%c8, %c0_32, %c0_33], %66 {strides = array<i32>} : memref<12x8x8xbf16, #tpu.memory_space<vmem>>, vector<1x8x8xbf16>,
    %67 = vector.extract_strided_slice %30 {offsets = [0, 72], sizes = [8, 8], strides = [1, 1]} : vector<8x96xbf16> to vector<8x8xbf16>
    %c9 = arith.constant 9 : index
    %c0_34 = arith.constant 0 : index
    %c0_35 = arith.constant 0 : index
    %68 = vector.load %arg15[%c9, %c0_34, %c0_35] : memref<12x8x8xbf16, #tpu.memory_space<vmem>>, vector<1x8x8xbf16>
    %69 = vector.shape_cast %68 : vector<1x8x8xbf16> to vector<8x8xbf16>
    %70 = vector.shape_cast %67 : vector<8x8xbf16> to vector<1x8x8xbf16>
    tpu.vector_store %arg15[%c9, %c0_34, %c0_35], %70 {strides = array<i32>} : memref<12x8x8xbf16, #tpu.memory_space<vmem>>, vector<1x8x8xbf16>,
    %71 = vector.extract_strided_slice %30 {offsets = [0, 80], sizes = [8, 8], strides = [1, 1]} : vector<8x96xbf16> to vector<8x8xbf16>
    %c10 = arith.constant 10 : index
    %c0_36 = arith.constant 0 : index
    %c0_37 = arith.constant 0 : index
    %72 = vector.load %arg15[%c10, %c0_36, %c0_37] : memref<12x8x8xbf16, #tpu.memory_space<vmem>>, vector<1x8x8xbf16>
    %73 = vector.shape_cast %72 : vector<1x8x8xbf16> to vector<8x8xbf16>
    %74 = vector.shape_cast %71 : vector<8x8xbf16> to vector<1x8x8xbf16>
    tpu.vector_store %arg15[%c10, %c0_36, %c0_37], %74 {strides = array<i32>} : memref<12x8x8xbf16, #tpu.memory_space<vmem>>, vector<1x8x8xbf16>,
    %75 = vector.extract_strided_slice %30 {offsets = [0, 88], sizes = [8, 8], strides = [1, 1]} : vector<8x96xbf16> to vector<8x8xbf16>
    %c11 = arith.constant 11 : index
    %c0_38 = arith.constant 0 : index
    %c0_39 = arith.constant 0 : index
    %76 = vector.load %arg15[%c11, %c0_38, %c0_39] : memref<12x8x8xbf16, #tpu.memory_space<vmem>>, vector<1x8x8xbf16>
    %77 = vector.shape_cast %76 : vector<1x8x8xbf16> to vector<8x8xbf16>
    %78 = vector.shape_cast %75 : vector<8x8xbf16> to vector<1x8x8xbf16>
    tpu.vector_store %arg15[%c11, %c0_38, %c0_39], %78 {strides = array<i32>} : memref<12x8x8xbf16, #tpu.memory_space<vmem>>, vector<1x8x8xbf16>,
    %79 = tpu.iota {dimensions = array<i32: 0>} : vector<8x8xi32>
    %80 = tpu.iota {dimensions = array<i32: 1>} : vector<8x8xi32>
    %81 = arith.cmpi sle, %80, %79 : vector<8x8xi32>
    %cst_40 = arith.constant 0.000000e+00 : f32
    %cst_41 = arith.constant -1.000000e+30 : f32
    %82 = vector.broadcast %cst_40 : f32 to vector<8x8xf32>
    %83 = vector.broadcast %cst_41 : f32 to vector<8x8xf32>
    %84 = arith.select %81, %82, %83 : vector<8x8xi1>, vector<8x8xf32>
    %cst_42 = arith.constant 0.000000e+00 : f32
    %85 = vector.broadcast %cst_42 : f32 to vector<8x32xf32>
    %c0_43 = arith.constant 0 : index
    %c0_44 = arith.constant 0 : index
    %86 = vector.load %arg16[%c0_43, %c0_44] : memref<8x32xf32, #tpu.memory_space<vmem>>, vector<8x32xf32>
    tpu.vector_store %arg16[%c0_43, %c0_44], %85 {strides = array<i32>} : memref<8x32xf32, #tpu.memory_space<vmem>>, vector<8x32xf32>,
    %c0_i32 = arith.constant 0 : i32
    %c4_i32 = arith.constant 4 : i32
    %87 = arith.addi %c0_i32, %c4_i32 : i32
    %c1_i32 = arith.constant 1 : i32
    scf.for %arg17 = %c0_i32 to %87 step %c1_i32  : i32 {
      %144 = arith.index_cast %arg17 : i32 to index
      %c0_76 = arith.constant 0 : index
      %c0_77 = arith.constant 0 : index
      %145 = vector.load %arg15[%144, %c0_76, %c0_77] : memref<12x8x8xbf16, #tpu.memory_space<vmem>>, vector<1x8x8xbf16>
      %146 = vector.shape_cast %145 : vector<1x8x8xbf16> to vector<8x8xbf16>
      %c4_i32_78 = arith.constant 4 : i32
      %147 = arith.addi %c4_i32_78, %arg17 : i32
      %148 = arith.index_cast %147 : i32 to index
      %c0_79 = arith.constant 0 : index
      %c0_80 = arith.constant 0 : index
      %149 = vector.load %arg15[%148, %c0_79, %c0_80] : memref<12x8x8xbf16, #tpu.memory_space<vmem>>, vector<1x8x8xbf16>
      %150 = vector.shape_cast %149 : vector<1x8x8xbf16> to vector<8x8xbf16>
      %c8_i32 = arith.constant 8 : i32
      %151 = arith.addi %c8_i32, %arg17 : i32
      %152 = arith.index_cast %151 : i32 to index
      %c0_81 = arith.constant 0 : index
      %c0_82 = arith.constant 0 : index
      %153 = vector.load %arg15[%152, %c0_81, %c0_82] : memref<12x8x8xbf16, #tpu.memory_space<vmem>>, vector<1x8x8xbf16>
      %154 = vector.shape_cast %153 : vector<1x8x8xbf16> to vector<8x8xbf16>
      %cst_83 = arith.constant dense<0.000000e+00> : vector<8x8xf32>
      %155 = tpu.matmul %146, %150, %cst_83 {dimension_numbers = #tpu.dot_dimension_numbers<[1], [1], [0], [0], [0, 0, 1, 0], [], []>} : vector<8x8xbf16>, vector<8x8xbf16>, vector<8x8xf32> -> vector<8x8xf32>
      %cst_84 = arith.constant 0.353553385 : f32
      %156 = vector.broadcast %cst_84 : f32 to vector<8x8xf32>
      %157 = arith.mulf %155, %156 : vector<8x8xf32>
      %158 = arith.addf %157, %84 : vector<8x8xf32>
      %cst_85 = arith.constant dense<0xFF800000> : vector<8xf32>
      %159 = vector.multi_reduction <maximumf>, %158, %cst_85 [1] : vector<8x8xf32> to vector<8xf32>
      %160 = vector.shape_cast %159 : vector<8xf32> to vector<8x1xf32>
      %161 = vector.broadcast %160 : vector<8x1xf32> to vector<8x8xf32>
      %162 = arith.subf %158, %161 : vector<8x8xf32>
      %163 = math.exp %162 : vector<8x8xf32>
      %cst_86 = arith.constant dense<0.000000e+00> : vector<8xf32>
      %164 = vector.multi_reduction <add>, %163, %cst_86 [1] : vector<8x8xf32> to vector<8xf32>
      %165 = vector.shape_cast %164 : vector<8xf32> to vector<8x1xf32>
      %166 = tpu.reciprocal %165 {approx = true} : vector<8x1xf32> -> vector<8x1xf32>
      %167 = vector.broadcast %166 : vector<8x1xf32> to vector<8x8xf32>
      %168 = arith.mulf %163, %167 : vector<8x8xf32>
      %169 = arith.truncf %168 : vector<8x8xf32> to vector<8x8xbf16>
      %cst_87 = arith.constant dense<0.000000e+00> : vector<8x8xf32>
      %170 = tpu.matmul %169, %154, %cst_87 {dimension_numbers = #tpu.dot_dimension_numbers<[1], [0], [0], [1], [0, 0, 1, 1], [], []>} : vector<8x8xbf16>, vector<8x8xbf16>, vector<8x8xf32> -> vector<8x8xf32>
      %c8_i32_88 = arith.constant 8 : i32
      %171 = arith.muli %arg17, %c8_i32_88 : i32
      %172 = tpu.assume_multiple %171, 8 : i32
      %173 = arith.index_cast %172 : i32 to index
      %c0_89 = arith.constant 0 : index
      %174 = vector.load %arg6[%173, %c0_89] : memref<32x32xbf16, #tpu.memory_space<vmem>>, vector<8x32xbf16>
      %c0_90 = arith.constant 0 : index
      %c0_91 = arith.constant 0 : index
      %175 = vector.load %arg16[%c0_90, %c0_91] : memref<8x32xf32, #tpu.memory_space<vmem>>, vector<8x32xf32>
      %176 = arith.truncf %170 : vector<8x8xf32> to vector<8x8xbf16>
      %cst_92 = arith.constant dense<0.000000e+00> : vector<8x32xf32>
      %177 = tpu.matmul %176, %174, %cst_92 {dimension_numbers = #tpu.dot_dimension_numbers<[1], [0], [0], [1], [0, 0, 1, 1], [], []>} : vector<8x8xbf16>, vector<8x32xbf16>, vector<8x32xf32> -> vector<8x32xf32>
      %178 = arith.addf %175, %177 : vector<8x32xf32>
      %c0_93 = arith.constant 0 : index
      %c0_94 = arith.constant 0 : index
      %179 = vector.load %arg16[%c0_93, %c0_94] : memref<8x32xf32, #tpu.memory_space<vmem>>, vector<8x32xf32>
      tpu.vector_store %arg16[%c0_93, %c0_94], %178 {strides = array<i32>} : memref<8x32xf32, #tpu.memory_space<vmem>>, vector<8x32xf32>,
    }
    %c4_i32_45 = arith.constant 4 : i32
    %c0_46 = arith.constant 0 : index
    %c0_47 = arith.constant 0 : index
    %88 = vector.load %arg16[%c0_46, %c0_47] : memref<8x32xf32, #tpu.memory_space<vmem>>, vector<8x32xf32>
    %c0_48 = arith.constant 0 : index
    %c0_49 = arith.constant 0 : index
    %89 = vector.load %arg7[%c0_48, %c0_49] : memref<1x32xf32, #tpu.memory_space<vmem>>, vector<1x32xf32>
    %90 = vector.broadcast %89 : vector<1x32xf32> to vector<8x32xf32>
    %91 = arith.addf %88, %90 : vector<8x32xf32>
    %92 = arith.addf %1, %91 : vector<8x32xf32>
    %c0_50 = arith.constant 0 : index
    %c0_51 = arith.constant 0 : index
    %93 = vector.load %arg8[%c0_50, %c0_51] : memref<1x32xf32, #tpu.memory_space<vmem>>, vector<1x32xf32>
    %c0_52 = arith.constant 0 : index
    %c0_53 = arith.constant 0 : index
    %94 = vector.load %arg9[%c0_52, %c0_53] : memref<1x32xf32, #tpu.memory_space<vmem>>, vector<1x32xf32>
    %cst_54 = arith.constant dense<0.000000e+00> : vector<8xf32>
    %95 = vector.multi_reduction <add>, %92, %cst_54 [1] : vector<8x32xf32> to vector<8xf32>
    %96 = vector.shape_cast %95 : vector<8xf32> to vector<8x1xf32>
    %cst_55 = arith.constant 3.200000e+01 : f32
    %97 = vector.broadcast %cst_55 : f32 to vector<8x1xf32>
    %98 = arith.divf %96, %97 : vector<8x1xf32>
    %99 = vector.broadcast %98 : vector<8x1xf32> to vector<8x32xf32>
    %100 = arith.subf %92, %99 : vector<8x32xf32>
    %101 = arith.mulf %100, %100 : vector<8x32xf32>
    %cst_56 = arith.constant dense<0.000000e+00> : vector<8xf32>
    %102 = vector.multi_reduction <add>, %101, %cst_56 [1] : vector<8x32xf32> to vector<8xf32>
    %103 = vector.shape_cast %102 : vector<8xf32> to vector<8x1xf32>
    %cst_57 = arith.constant 3.200000e+01 : f32
    %104 = vector.broadcast %cst_57 : f32 to vector<8x1xf32>
    %105 = arith.divf %103, %104 : vector<8x1xf32>
    %cst_58 = arith.constant 9.99999974E-6 : f32
    %106 = vector.broadcast %cst_58 : f32 to vector<8x1xf32>
    %107 = arith.addf %105, %106 : vector<8x1xf32>
    %108 = math.rsqrt %107 : vector<8x1xf32>
    %109 = vector.broadcast %108 : vector<8x1xf32> to vector<8x32xf32>
    %110 = arith.mulf %100, %109 : vector<8x32xf32>
    %111 = vector.broadcast %93 : vector<1x32xf32> to vector<8x32xf32>
    %112 = arith.mulf %110, %111 : vector<8x32xf32>
    %113 = vector.broadcast %94 : vector<1x32xf32> to vector<8x32xf32>
    %114 = arith.addf %112, %113 : vector<8x32xf32>
    %115 = arith.truncf %114 : vector<8x32xf32> to vector<8x32xbf16>
    %c0_59 = arith.constant 0 : index
    %c0_60 = arith.constant 0 : index
    %116 = vector.load %arg10[%c0_59, %c0_60] : memref<32x128xbf16, #tpu.memory_space<vmem>>, vector<32x128xbf16>
    %cst_61 = arith.constant dense<0.000000e+00> : vector<8x128xf32>
    %117 = tpu.matmul %115, %116, %cst_61 {dimension_numbers = #tpu.dot_dimension_numbers<[1], [0], [0], [1], [0, 0, 1, 1], [], []>} : vector<8x32xbf16>, vector<32x128xbf16>, vector<8x128xf32> -> vector<8x128xf32>
    %c0_62 = arith.constant 0 : index
    %c0_63 = arith.constant 0 : index
    %118 = vector.load %arg11[%c0_62, %c0_63] : memref<1x128xf32, #tpu.memory_space<vmem>>, vector<1x128xf32>
    %119 = vector.broadcast %118 : vector<1x128xf32> to vector<8x128xf32>
    %120 = arith.addf %117, %119 : vector<8x128xf32>
    %cst_64 = arith.constant 5.000000e-01 : f32
    %121 = vector.broadcast %cst_64 : f32 to vector<8x128xf32>
    %122 = arith.mulf %121, %120 : vector<8x128xf32>
    %cst_65 = arith.constant 4.471500e-02 : f32
    %123 = vector.broadcast %cst_65 : f32 to vector<8x128xf32>
    %124 = arith.mulf %123, %120 : vector<8x128xf32>
    %125 = arith.mulf %124, %120 : vector<8x128xf32>
    %126 = arith.mulf %125, %120 : vector<8x128xf32>
    %127 = arith.addf %120, %126 : vector<8x128xf32>
    %cst_66 = arith.constant 0.797884583 : f32
    %128 = vector.broadcast %cst_66 : f32 to vector<8x128xf32>
    %129 = arith.mulf %128, %127 : vector<8x128xf32>
    %130 = math.tanh %129 : vector<8x128xf32>
    %cst_67 = arith.constant 1.000000e+00 : f32
    %131 = vector.broadcast %cst_67 : f32 to vector<8x128xf32>
    %132 = arith.addf %131, %130 : vector<8x128xf32>
    %133 = arith.mulf %122, %132 : vector<8x128xf32>
    %134 = arith.truncf %133 : vector<8x128xf32> to vector<8x128xbf16>
    %c0_68 = arith.constant 0 : index
    %c0_69 = arith.constant 0 : index
    %135 = vector.load %arg12[%c0_68, %c0_69] : memref<128x32xbf16, #tpu.memory_space<vmem>>, vector<128x32xbf16>
    %cst_70 = arith.constant dense<0.000000e+00> : vector<8x32xf32>
    %136 = tpu.matmul %134, %135, %cst_70 {dimension_numbers = #tpu.dot_dimension_numbers<[1], [0], [0], [1], [0, 0, 1, 1], [], []>} : vector<8x128xbf16>, vector<128x32xbf16>, vector<8x32xf32> -> vector<8x32xf32>
    %c0_71 = arith.constant 0 : index
    %c0_72 = arith.constant 0 : index
    %137 = vector.load %arg13[%c0_71, %c0_72] : memref<1x32xf32, #tpu.memory_space<vmem>>, vector<1x32xf32>
    %138 = vector.broadcast %137 : vector<1x32xf32> to vector<8x32xf32>
    %139 = arith.addf %136, %138 : vector<8x32xf32>
    %140 = arith.addf %92, %139 : vector<8x32xf32>
    %c0_73 = arith.constant 0 : index
    %c0_74 = arith.constant 0 : index
    %c0_75 = arith.constant 0 : index
    %141 = vector.load %arg14[%c0_73, %c0_74, %c0_75] : memref<1x8x32xf32, #tpu.memory_space<vmem>>, vector<1x8x32xf32>
    %142 = vector.shape_cast %141 : vector<1x8x32xf32> to vector<8x32xf32>
    %143 = vector.shape_cast %140 : vector<8x32xf32> to vector<1x8x32xf32>
    tpu.vector_store %arg14[%c0_73, %c0_74, %c0_75], %143 {strides = array<i32>} : memref<1x8x32xf32, #tpu.memory_space<vmem>>, vector<1x8x32xf32>,
    return
  }
  func.func @transform_0(%arg0: i32) -> (i32, i32, i32) {
    %c0_i32 = arith.constant 0 : i32
    %c0_i32_0 = arith.constant 0 : i32
    %c0_i32_1 = arith.constant 0 : i32
    return %arg0, %c0_i32, %c0_i32_0 : i32, i32, i32
  }
  func.func @transform_1(%arg0: i32) -> (i32, i32) {
    %c0_i32 = arith.constant 0 : i32
    %c0_i32_0 = arith.constant 0 : i32
    %c0_i32_1 = arith.constant 0 : i32
    return %c0_i32, %c0_i32_0 : i32, i32
  }
  func.func @transform_2(%arg0: i32) -> (i32, i32) {
    %c0_i32 = arith.constant 0 : i32
    %c0_i32_0 = arith.constant 0 : i32
    %c0_i32_1 = arith.constant 0 : i32
    return %c0_i32, %c0_i32_0 : i32, i32
  }
  func.func @transform_3(%arg0: i32) -> (i32, i32) {
    %c0_i32 = arith.constant 0 : i32
    %c0_i32_0 = arith.constant 0 : i32
    %c0_i32_1 = arith.constant 0 : i32
    return %c0_i32, %c0_i32_0 : i32, i32
  }
  func.func @transform_4(%arg0: i32) -> (i32, i32) {
    %c0_i32 = arith.constant 0 : i32
    %c0_i32_0 = arith.constant 0 : i32
    %c0_i32_1 = arith.constant 0 : i32
    return %c0_i32, %c0_i32_0 : i32, i32
  }
  func.func @transform_5(%arg0: i32) -> (i32, i32) {
    %c0_i32 = arith.constant 0 : i32
    %c0_i32_0 = arith.constant 0 : i32
    %c0_i32_1 = arith.constant 0 : i32
    return %c0_i32, %c0_i32_0 : i32, i32
  }
  func.func @transform_6(%arg0: i32) -> (i32, i32) {
    %c0_i32 = arith.constant 0 : i32
    %c0_i32_0 = arith.constant 0 : i32
    %c0_i32_1 = arith.constant 0 : i32
    return %c0_i32, %c0_i32_0 : i32, i32
  }
  func.func @transform_7(%arg0: i32) -> (i32, i32) {
    %c0_i32 = arith.constant 0 : i32
    %c0_i32_0 = arith.constant 0 : i32
    %c0_i32_1 = arith.constant 0 : i32
    return %c0_i32, %c0_i32_0 : i32, i32
  }
  func.func @transform_8(%arg0: i32) -> (i32, i32) {
    %c0_i32 = arith.constant 0 : i32
    %c0_i32_0 = arith.constant 0 : i32
    %c0_i32_1 = arith.constant 0 : i32
    return %c0_i32, %c0_i32_0 : i32, i32
  }
  func.func @transform_9(%arg0: i32) -> (i32, i32) {
    %c0_i32 = arith.constant 0 : i32
    %c0_i32_0 = arith.constant 0 : i32
    %c0_i32_1 = arith.constant 0 : i32
    return %c0_i32, %c0_i32_0 : i32, i32
  }
  func.func @transform_10(%arg0: i32) -> (i32, i32) {
    %c0_i32 = arith.constant 0 : i32
    %c0_i32_0 = arith.constant 0 : i32
    %c0_i32_1 = arith.constant 0 : i32
    return %c0_i32, %c0_i32_0 : i32, i32
  }
  func.func @transform_11(%arg0: i32) -> (i32, i32) {
    %c0_i32 = arith.constant 0 : i32
    %c0_i32_0 = arith.constant 0 : i32
    %c0_i32_1 = arith.constant 0 : i32
    return %c0_i32, %c0_i32_0 : i32, i32
  }
  func.func @transform_12(%arg0: i32) -> (i32, i32) {
    %c0_i32 = arith.constant 0 : i32
    %c0_i32_0 = arith.constant 0 : i32
    %c0_i32_1 = arith.constant 0 : i32
    return %c0_i32, %c0_i32_0 : i32, i32
  }
  func.func @transform_13(%arg0: i32) -> (i32, i32, i32) {
    %c0_i32 = arith.constant 0 : i32
    %c0_i32_0 = arith.constant 0 : i32
    %c0_i32_1 = arith.constant 0 : i32
    return %arg0, %c0_i32, %c0_i32_0 : i32, i32, i32
  }
}

</mosaic_0001>

<llo_original>
// kernel: tpu_custom_call.1
$region0: #{tpu_custom_call.1}
  #allocation0 [shape = 'u32[]', space=smem, size = 0x4, offset = 0x4, fixed_abs, tag = 'smem constant byte address 0x4 - core index']
  #allocation1 [shape = 'u32[72,128]{1,0:T(1,128)}', space=vmem, size = 0x9000, scoped, tag = 'internal scratch']
  #allocation2 [shape = 'bf16[12,8,8]{2,1,0:T(8,128)(2,1)}', space=vmem, size = 0x6000, scoped, tag = 'scratch operand']
  #allocation3 [shape = 'f32[8,32]{1,0:T(8,128)}', space=vmem, size = 0x1000, scoped, tag = 'scratch operand']
  %s0 = inlined_call_operand.vmem [shape: f32[2,8,32], index: 0, kind: input, shape index: {}]
  %s1 = inlined_call_operand.vmem [shape: f32[1,32], index: 1, kind: input, shape index: {}]
  %s2 = inlined_call_operand.vmem [shape: f32[1,32], index: 2, kind: input, shape index: {}]
  %s3 = inlined_call_operand.vmem [shape: bf16[32,96], index: 3, kind: input, shape index: {}]
  %s4 = inlined_call_operand.vmem [shape: f32[1,96], index: 4, kind: input, shape index: {}]
  %s5 = inlined_call_operand.vmem [shape: bf16[32,32], index: 5, kind: input, shape index: {}]
  %s6 = inlined_call_operand.vmem [shape: f32[1,32], index: 6, kind: input, shape index: {}]
  %s7 = inlined_call_operand.vmem [shape: f32[1,32], index: 7, kind: input, shape index: {}]
  %s8 = inlined_call_operand.vmem [shape: f32[1,32], index: 8, kind: input, shape index: {}]
  %s9 = inlined_call_operand.vmem [shape: bf16[32,128], index: 9, kind: input, shape index: {}]
  %s10 = inlined_call_operand.vmem [shape: f32[1,128], index: 10, kind: input, shape index: {}]
  %s11 = inlined_call_operand.vmem [shape: bf16[128,32], index: 11, kind: input, shape index: {}]
  %s12 = inlined_call_operand.vmem [shape: f32[1,32], index: 12, kind: input, shape index: {}]
  %s13 = inlined_call_operand.hbm [shape: f32[2,8,32], index: 13, kind: output, shape index: {}]
  %s14 = sld [smem:[#allocation0]]
  $region92: #{tpu_custom_call.1} parent=0
    _
  %s16 = ssub.s32 1, %s14
  %s17 = scalar_select 0, %s16, %s14
  $region1: #{tpu_custom_call.1} parent=0
    #allocation4 [shape = 'u8[8192]{0}', space=vmem, size = 0x2000, scoped, tag = 'output window, operand 0']
    #allocation5 [shape = 's32[2]{0}', space=sflag, size = 0x8, scoped, tag = 'scoped memory for tpu_custom_call.1']
    %18 = vsyncpa [#allocation5], 0
    %s19 = scalar_lea.sflag [#allocation5], 1
    %20 = vsyncpa %s19, 0
    loop: start=0, step=1, limit=4
    $region2: #{tpu_custom_call.1} parent=1 // loop_pre_header
      _
    $region3: #{tpu_custom_call.1} parent=1 // loop_header
      %s22 = sphi 0, %s26
      %p23 = scmp.ge.s32.totalorder %s22, 4
      %s32 = sphi 0, %s34
      %s35 = sphi 0, %s32
      %s36 = sphi 0, %s35
      %s52 = sphi 0, %s36
      %s56 = sphi 0, %s56
      %s58 = sphi 0, %s56
      %s59 = sphi 0, %s58
      %s73 = sphi 0, %s59
      %s77 = sphi 0, %s77
      %s79 = sphi 0, %s77
      %s80 = sphi 0, %s79
      %s94 = sphi 0, %s80
      %s98 = sphi 0, %s98
      %s100 = sphi 0, %s98
      %s101 = sphi 0, %s100
      %s115 = sphi 0, %s101
      %s119 = sphi 0, %s119
      %s121 = sphi 0, %s119
      %s122 = sphi 0, %s121
      %s136 = sphi 0, %s122
      %s140 = sphi 0, %s140
      %s142 = sphi 0, %s140
      %s143 = sphi 0, %s142
      %s157 = sphi 0, %s143
      %s161 = sphi 0, %s161
      %s163 = sphi 0, %s161
      %s164 = sphi 0, %s163
      %s178 = sphi 0, %s164
      %s182 = sphi 0, %s182
      %s184 = sphi 0, %s182
      %s185 = sphi 0, %s184
      %s199 = sphi 0, %s185
      %s203 = sphi 0, %s203
      %s205 = sphi 0, %s203
      %s206 = sphi 0, %s205
      %s220 = sphi 0, %s206
      %s224 = sphi 0, %s224
      %s226 = sphi 0, %s224
      %s227 = sphi 0, %s226
      %s241 = sphi 0, %s227
      %s245 = sphi 0, %s245
      %s247 = sphi 0, %s245
      %s248 = sphi 0, %s247
      %s262 = sphi 0, %s248
      %s266 = sphi 0, %s266
      %s268 = sphi 0, %s266
      %s269 = sphi 0, %s268
      %s283 = sphi 0, %s269
      %s287 = sphi 0, %s287
      %s289 = sphi 0, %s287
      %s290 = sphi 0, %s289
      %s304 = sphi 0, %s290
      %s310 = sphi 0, %s312
      %s313 = sphi 0, %s310
      %s314 = sphi 0, %s313
      %s330 = sphi 0, %s314
    $region4: #{tpu_custom_call.1} parent=1 // loop_header_branch
      %25 = sbr.rel (%p23) target = $region8
    $region5: #{tpu_custom_call.1} parent=1 // loop_body
      %s27 = ssub.s32 %s22, 1
      %s28 = ssub.s32 %s22, 2
      %s29 = sadd.s32 %s22, 1
      %s30 = ssub.s32 %s22, %s29
      %p31 = scmp.eq.s32.totalorder %s30, 0
      %s33 = sadd.s32 %s32, 1
      %s34 = scalar_select %p31, %s32, %s33
      %p37 = pneg %p31
      %p38 = scmp.eq.s32.totalorder %s22, 1
      %p39 = por %p37, %p38
      %p40 = scmp.ne.s32.totalorder %s32, %s35
      %p41 = scmp.eq.s32.totalorder %s22, 0
      %p42 = por %p40, %p41
      %p43 = scmp.ne.s32.totalorder %s32, %s35
      %p44 = scmp.eq.s32.totalorder %s27, 1
      %p45 = por %p43, %p44
      %p46 = scmp.ne.s32.totalorder %s35, %s36
      %p47 = scmp.eq.s32.totalorder %s27, 0
      %p48 = por %p46, %p47
      %p49 = scmp.ne.s32.totalorder %s35, %s36
      %p50 = scmp.eq.s32.totalorder %s28, 1
      %p51 = por %p49, %p50
      %p53 = scmp.ne.s32.totalorder %s36, %s52
      %p54 = scmp.eq.s32.totalorder %s28, 0
      %p55 = por %p53, %p54
      %s57 = sadd.s32 %s56, 1
      %p60 = scmp.eq.s32.totalorder %s22, 1
      %p61 = scmp.ne.s32.totalorder %s56, %s58
      %p62 = scmp.eq.s32.totalorder %s22, 0
      %p63 = por %p61, %p62
      %p64 = scmp.ne.s32.totalorder %s56, %s58
      %p65 = scmp.eq.s32.totalorder %s27, 1
      %p66 = por %p64, %p65
      %p67 = scmp.ne.s32.totalorder %s58, %s59
      %p68 = scmp.eq.s32.totalorder %s27, 0
      %p69 = por %p67, %p68
      %p70 = scmp.ne.s32.totalorder %s58, %s59
      %p71 = scmp.eq.s32.totalorder %s28, 1
      %p72 = por %p70, %p71
      %p74 = scmp.ne.s32.totalorder %s59, %s73
      %p75 = scmp.eq.s32.totalorder %s28, 0
      %p76 = por %p74, %p75
      %s78 = sadd.s32 %s77, 1
      %p81 = scmp.eq.s32.totalorder %s22, 1
      %p82 = scmp.ne.s32.totalorder %s77, %s79
      %p83 = scmp.eq.s32.totalorder %s22, 0
      %p84 = por %p82, %p83
      %p85 = scmp.ne.s32.totalorder %s77, %s79
      %p86 = scmp.eq.s32.totalorder %s27, 1
      %p87 = por %p85, %p86
      %p88 = scmp.ne.s32.totalorder %s79, %s80
      %p89 = scmp.eq.s32.totalorder %s27, 0
      %p90 = por %p88, %p89
      %p91 = scmp.ne.s32.totalorder %s79, %s80
      %p92 = scmp.eq.s32.totalorder %s28, 1
      %p93 = por %p91, %p92
      %p95 = scmp.ne.s32.totalorder %s80, %s94
      %p96 = scmp.eq.s32.totalorder %s28, 0
      %p97 = por %p95, %p96
      %s99 = sadd.s32 %s98, 1
      %p102 = scmp.eq.s32.totalorder %s22, 1
      %p103 = scmp.ne.s32.totalorder %s98, %s100
      %p104 = scmp.eq.s32.totalorder %s22, 0
      %p105 = por %p103, %p104
      %p106 = scmp.ne.s32.totalorder %s98, %s100
      %p107 = scmp.eq.s32.totalorder %s27, 1
      %p108 = por %p106, %p107
      %p109 = scmp.ne.s32.totalorder %s100, %s101
      %p110 = scmp.eq.s32.totalorder %s27, 0
      %p111 = por %p109, %p110
      %p112 = scmp.ne.s32.totalorder %s100, %s101
      %p113 = scmp.eq.s32.totalorder %s28, 1
      %p114 = por %p112, %p113
      %p116 = scmp.ne.s32.totalorder %s101, %s115
      %p117 = scmp.eq.s32.totalorder %s28, 0
      %p118 = por %p116, %p117
      %s120 = sadd.s32 %s119, 1
      %p123 = scmp.eq.s32.totalorder %s22, 1
      %p124 = scmp.ne.s32.totalorder %s119, %s121
      %p125 = scmp.eq.s32.totalorder %s22, 0
      %p126 = por %p124, %p125
      %p127 = scmp.ne.s32.totalorder %s119, %s121
      %p128 = scmp.eq.s32.totalorder %s27, 1
      %p129 = por %p127, %p128
      %p130 = scmp.ne.s32.totalorder %s121, %s122
      %p131 = scmp.eq.s32.totalorder %s27, 0
      %p132 = por %p130, %p131
      %p133 = scmp.ne.s32.totalorder %s121, %s122
      %p134 = scmp.eq.s32.totalorder %s28, 1
      %p135 = por %p133, %p134
      %p137 = scmp.ne.s32.totalorder %s122, %s136
      %p138 = scmp.eq.s32.totalorder %s28, 0
      %p139 = por %p137, %p138
      %s141 = sadd.s32 %s140, 1
      %p144 = scmp.eq.s32.totalorder %s22, 1
      %p145 = scmp.ne.s32.totalorder %s140, %s142
      %p146 = scmp.eq.s32.totalorder %s22, 0
      %p147 = por %p145, %p146
      %p148 = scmp.ne.s32.totalorder %s140, %s142
      %p149 = scmp.eq.s32.totalorder %s27, 1
      %p150 = por %p148, %p149
      %p151 = scmp.ne.s32.totalorder %s142, %s143
      %p152 = scmp.eq.s32.totalorder %s27, 0
      %p153 = por %p151, %p152
      %p154 = scmp.ne.s32.totalorder %s142, %s143
      %p155 = scmp.eq.s32.totalorder %s28, 1
      %p156 = por %p154, %p155
      %p158 = scmp.ne.s32.totalorder %s143, %s157
      %p159 = scmp.eq.s32.totalorder %s28, 0
      %p160 = por %p158, %p159
      %s162 = sadd.s32 %s161, 1
      %p165 = scmp.eq.s32.totalorder %s22, 1
      %p166 = scmp.ne.s32.totalorder %s161, %s163
      %p167 = scmp.eq.s32.totalorder %s22, 0
      %p168 = por %p166, %p167
      %p169 = scmp.ne.s32.totalorder %s161, %s163
      %p170 = scmp.eq.s32.totalorder %s27, 1
      %p171 = por %p169, %p170
      %p172 = scmp.ne.s32.totalorder %s163, %s164
      %p173 = scmp.eq.s32.totalorder %s27, 0
      %p174 = por %p172, %p173
      %p175 = scmp.ne.s32.totalorder %s163, %s164
      %p176 = scmp.eq.s32.totalorder %s28, 1
      %p177 = por %p175, %p176
      %p179 = scmp.ne.s32.totalorder %s164, %s178
      %p180 = scmp.eq.s32.totalorder %s28, 0
      %p181 = por %p179, %p180
      %s183 = sadd.s32 %s182, 1
      %p186 = scmp.eq.s32.totalorder %s22, 1
      %p187 = scmp.ne.s32.totalorder %s182, %s184
      %p188 = scmp.eq.s32.totalorder %s22, 0
      %p189 = por %p187, %p188
      %p190 = scmp.ne.s32.totalorder %s182, %s184
      %p191 = scmp.eq.s32.totalorder %s27, 1
      %p192 = por %p190, %p191
      %p193 = scmp.ne.s32.totalorder %s184, %s185
      %p194 = scmp.eq.s32.totalorder %s27, 0
      %p195 = por %p193, %p194
      %p196 = scmp.ne.s32.totalorder %s184, %s185
      %p197 = scmp.eq.s32.totalorder %s28, 1
      %p198 = por %p196, %p197
      %p200 = scmp.ne.s32.totalorder %s185, %s199
      %p201 = scmp.eq.s32.totalorder %s28, 0
      %p202 = por %p200, %p201
      %s204 = sadd.s32 %s203, 1
      %p207 = scmp.eq.s32.totalorder %s22, 1
      %p208 = scmp.ne.s32.totalorder %s203, %s205
      %p209 = scmp.eq.s32.totalorder %s22, 0
      %p210 = por %p208, %p209
      %p211 = scmp.ne.s32.totalorder %s203, %s205
      %p212 = scmp.eq.s32.totalorder %s27, 1
      %p213 = por %p211, %p212
      %p214 = scmp.ne.s32.totalorder %s205, %s206
      %p215 = scmp.eq.s32.totalorder %s27, 0
      %p216 = por %p214, %p215
      %p217 = scmp.ne.s32.totalorder %s205, %s206
      %p218 = scmp.eq.s32.totalorder %s28, 1
      %p219 = por %p217, %p218
      %p221 = scmp.ne.s32.totalorder %s206, %s220
      %p222 = scmp.eq.s32.totalorder %s28, 0
      %p223 = por %p221, %p222
      %s225 = sadd.s32 %s224, 1
      %p228 = scmp.eq.s32.totalorder %s22, 1
      %p229 = scmp.ne.s32.totalorder %s224, %s226
      %p230 = scmp.eq.s32.totalorder %s22, 0
      %p231 = por %p229, %p230
      %p232 = scmp.ne.s32.totalorder %s224, %s226
      %p233 = scmp.eq.s32.totalorder %s27, 1
      %p234 = por %p232, %p233
      %p235 = scmp.ne.s32.totalorder %s226, %s227
      %p236 = scmp.eq.s32.totalorder %s27, 0
      %p237 = por %p235, %p236
      %p238 = scmp.ne.s32.totalorder %s226, %s227
      %p239 = scmp.eq.s32.totalorder %s28, 1
      %p240 = por %p238, %p239
      %p242 = scmp.ne.s32.totalorder %s227, %s241
      %p243 = scmp.eq.s32.totalorder %s28, 0
      %p244 = por %p242, %p243
      %s246 = sadd.s32 %s245, 1
      %p249 = scmp.eq.s32.totalorder %s22, 1
      %p250 = scmp.ne.s32.totalorder %s245, %s247
      %p251 = scmp.eq.s32.totalorder %s22, 0
      %p252 = por %p250, %p251
      %p253 = scmp.ne.s32.totalorder %s245, %s247
      %p254 = scmp.eq.s32.totalorder %s27, 1
      %p255 = por %p253, %p254
      %p256 = scmp.ne.s32.totalorder %s247, %s248
      %p257 = scmp.eq.s32.totalorder %s27, 0
      %p258 = por %p256, %p257
      %p259 = scmp.ne.s32.totalorder %s247, %s248
      %p260 = scmp.eq.s32.totalorder %s28, 1
      %p261 = por %p259, %p260
      %p263 = scmp.ne.s32.totalorder %s248, %s262
      %p264 = scmp.eq.s32.totalorder %s28, 0
      %p265 = por %p263, %p264
      %s267 = sadd.s32 %s266, 1
      %p270 = scmp.eq.s32.totalorder %s22, 1
      %p271 = scmp.ne.s32.totalorder %s266, %s268
      %p272 = scmp.eq.s32.totalorder %s22, 0
      %p273 = por %p271, %p272
      %p274 = scmp.ne.s32.totalorder %s266, %s268
      %p275 = scmp.eq.s32.totalorder %s27, 1
      %p276 = por %p274, %p275
      %p277 = scmp.ne.s32.totalorder %s268, %s269
      %p278 = scmp.eq.s32.totalorder %s27, 0
      %p279 = por %p277, %p278
      %p280 = scmp.ne.s32.totalorder %s268, %s269
      %p281 = scmp.eq.s32.totalorder %s28, 1
      %p282 = por %p280, %p281
      %p284 = scmp.ne.s32.totalorder %s269, %s283
      %p285 = scmp.eq.s32.totalorder %s28, 0
      %p286 = por %p284, %p285
      %s288 = sadd.s32 %s287, 1
      %p291 = scmp.eq.s32.totalorder %s22, 1
      %p292 = scmp.ne.s32.totalorder %s287, %s289
      %p293 = scmp.eq.s32.totalorder %s22, 0
      %p294 = por %p292, %p293
      %p295 = scmp.ne.s32.totalorder %s287, %s289
      %p296 = scmp.eq.s32.totalorder %s27, 1
      %p297 = por %p295, %p296
      %p298 = scmp.ne.s32.totalorder %s289, %s290
      %p299 = scmp.eq.s32.totalorder %s27, 0
      %p300 = por %p298, %p299
      %p301 = scmp.ne.s32.totalorder %s289, %s290
      %p302 = scmp.eq.s32.totalorder %s28, 1
      %p303 = por %p301, %p302
      %p305 = scmp.ne.s32.totalorder %s290, %s304
      %p306 = scmp.eq.s32.totalorder %s28, 0
      %p307 = por %p305, %p306
      %s308 = ssub.s32 %s22, %s29
      %p309 = scmp.eq.s32.totalorder %s308, 0
      %s311 = sadd.s32 %s310, 1
      %s312 = scalar_select %p309, %s310, %s311
      %p315 = pneg %p309
      %p316 = scmp.eq.s32.totalorder %s22, 1
      %p317 = por %p315, %p316
      %p318 = scmp.ne.s32.totalorder %s310, %s313
      %p319 = scmp.eq.s32.totalorder %s22, 0
      %p320 = por %p318, %p319
      %p321 = scmp.ne.s32.totalorder %s310, %s313
      %p322 = scmp.eq.s32.totalorder %s27, 1
      %p323 = por %p321, %p322
      %p324 = scmp.ne.s32.totalorder %s313, %s314
      %p325 = scmp.eq.s32.totalorder %s27, 0
      %p326 = por %p324, %p325
      %p327 = scmp.ne.s32.totalorder %s313, %s314
      %p328 = scmp.eq.s32.totalorder %s28, 1
      %p329 = por %p327, %p328
      %p331 = scmp.ne.s32.totalorder %s314, %s330
      %p332 = scmp.eq.s32.totalorder %s28, 0
      %p333 = por %p331, %p332
      %p334 = scmp.le.s32.totalorder 1, %s22
      %p335 = scmp.lt.s32.totalorder %s22, 3
      %p336 = pnand %p334, %p335
      %p337 = pneg %p336
      // Predicated region
      $region9: #{tpu_custom_call.1} parent=5 // pred_check
        _
      $region10: #{tpu_custom_call.1} parent=5 // pred_check_branch
        %339 = sbr.rel (%p336) target = $region12
      $region11: #{tpu_custom_call.1} parent=5 // pred_region
        %s340 = ssub.s32 %s22, 1
        // Predicated region
        $region13: #{tpu_custom_call.1} parent=11 // pred_check
          %p341 = pneg %p69
        $region14: #{tpu_custom_call.1} parent=11 // pred_check_branch
          %343 = sbr.rel (%p341) target = $region16
        $region15: #{tpu_custom_call.1} parent=11 // pred_region
          _
        $region16: #{tpu_custom_call.1} parent=11 // pred_fallthru
          _
        // Predicated region
        $region17: #{tpu_custom_call.1} parent=11 // pred_check
          %p344 = pneg %p90
        $region18: #{tpu_custom_call.1} parent=11 // pred_check_branch
          %346 = sbr.rel (%p344) target = $region20
        $region19: #{tpu_custom_call.1} parent=11 // pred_region
          _
        $region20: #{tpu_custom_call.1} parent=11 // pred_fallthru
          _
        // Predicated region
        $region21: #{tpu_custom_call.1} parent=11 // pred_check
          %p347 = pneg %p111
        $region22: #{tpu_custom_call.1} parent=11 // pred_check_branch
          %349 = sbr.rel (%p347) target = $region24
        $region23: #{tpu_custom_call.1} parent=11 // pred_region
          _
        $region24: #{tpu_custom_call.1} parent=11 // pred_fallthru
          _
        // Predicated region
        $region25: #{tpu_custom_call.1} parent=11 // pred_check
          %p350 = pneg %p132
        $region26: #{tpu_custom_call.1} parent=11 // pred_check_branch
          %352 = sbr.rel (%p350) target = $region28
        $region27: #{tpu_custom_call.1} parent=11 // pred_region
          _
        $region28: #{tpu_custom_call.1} parent=11 // pred_fallthru
          _
        // Predicated region
        $region29: #{tpu_custom_call.1} parent=11 // pred_check
          %p353 = pneg %p153
        $region30: #{tpu_custom_call.1} parent=11 // pred_check_branch
          %355 = sbr.rel (%p353) target = $region32
        $region31: #{tpu_custom_call.1} parent=11 // pred_region
          _
        $region32: #{tpu_custom_call.1} parent=11 // pred_fallthru
          _
        // Predicated region
        $region33: #{tpu_custom_call.1} parent=11 // pred_check
          %p356 = pneg %p174
        $region34: #{tpu_custom_call.1} parent=11 // pred_check_branch
          %358 = sbr.rel (%p356) target = $region36
        $region35: #{tpu_custom_call.1} parent=11 // pred_region
          _
        $region36: #{tpu_custom_call.1} parent=11 // pred_fallthru
          _
        // Predicated region
        $region37: #{tpu_custom_call.1} parent=11 // pred_check
          %p359 = pneg %p195
        $region38: #{tpu_custom_call.1} parent=11 // pred_check_branch
          %361 = sbr.rel (%p359) target = $region40
        $region39: #{tpu_custom_call.1} parent=11 // pred_region
          _
        $region40: #{tpu_custom_call.1} parent=11 // pred_fallthru
          _
        // Predicated region
        $region41: #{tpu_custom_call.1} parent=11 // pred_check
          %p362 = pneg %p216
        $region42: #{tpu_custom_call.1} parent=11 // pred_check_branch
          %364 = sbr.rel (%p362) target = $region44
        $region43: #{tpu_custom_call.1} parent=11 // pred_region
          _
        $region44: #{tpu_custom_call.1} parent=11 // pred_fallthru
          _
        // Predicated region
        $region45: #{tpu_custom_call.1} parent=11 // pred_check
          %p365 = pneg %p237
        $region46: #{tpu_custom_call.1} parent=11 // pred_check_branch
          %367 = sbr.rel (%p365) target = $region48
        $region47: #{tpu_custom_call.1} parent=11 // pred_region
          _
        $region48: #{tpu_custom_call.1} parent=11 // pred_fallthru
          _
        // Predicated region
        $region49: #{tpu_custom_call.1} parent=11 // pred_check
          %p368 = pneg %p258
        $region50: #{tpu_custom_call.1} parent=11 // pred_check_branch
          %370 = sbr.rel (%p368) target = $region52
        $region51: #{tpu_custom_call.1} parent=11 // pred_region
          _
        $region52: #{tpu_custom_call.1} parent=11 // pred_fallthru
          _
        // Predicated region
        $region53: #{tpu_custom_call.1} parent=11 // pred_check
          %p371 = pneg %p279
        $region54: #{tpu_custom_call.1} parent=11 // pred_check_branch
          %373 = sbr.rel (%p371) target = $region56
        $region55: #{tpu_custom_call.1} parent=11 // pred_region
          _
        $region56: #{tpu_custom_call.1} parent=11 // pred_fallthru
          _
        // Predicated region
        $region57: #{tpu_custom_call.1} parent=11 // pred_check
          %p374 = pneg %p300
        $region58: #{tpu_custom_call.1} parent=11 // pred_check_branch
          %376 = sbr.rel (%p374) target = $region60
        $region59: #{tpu_custom_call.1} parent=11 // pred_region
          _
        $region60: #{tpu_custom_call.1} parent=11 // pred_fallthru
          _
      $region12: #{tpu_custom_call.1} parent=5 // pred_fallthru
        _
      %p377 = scmp.lt.s32.totalorder %s22, 2
      // Predicated region
      $region61: #{tpu_custom_call.1} parent=5 // pred_check
        %p378 = pneg %p377
      $region62: #{tpu_custom_call.1} parent=5 // pred_check_branch
        %380 = sbr.rel (%p378) target = $region64
      $region63: #{tpu_custom_call.1} parent=5 // pred_region
        // Predicated region
        $region65: #{tpu_custom_call.1} parent=63 // pred_check
          %p381 = pneg %p42
        $region66: #{tpu_custom_call.1} parent=63 // pred_check_branch
          %383 = sbr.rel (%p381) target = $region68
        $region67: #{tpu_custom_call.1} parent=63 // pred_region
          %p384 = scmp.lt.s32.totalorder %s22, 1
          %s385 = scalar_select %p384, %s22, 1
          %s386 = smul.addr %s385, 8
          %s387 = scalar_lea.vmem %s0, %s386
        $region68: #{tpu_custom_call.1} parent=63 // pred_fallthru
          _
      $region64: #{tpu_custom_call.1} parent=5 // pred_fallthru
        _
      %p388 = scmp.le.s32.totalorder 1, %s22
      %p389 = scmp.lt.s32.totalorder %s22, 3
      %p390 = pnand %p388, %p389
      %p391 = pneg %p390
      // Predicated region
      $region69: #{tpu_custom_call.1} parent=5 // pred_check
        _
      $region70: #{tpu_custom_call.1} parent=5 // pred_check_branch
        %393 = sbr.rel (%p390) target = $region72
      $region71: #{tpu_custom_call.1} parent=5 // pred_region
        %s394 = ssub.s32 %s22, 1
        %p395 = scmp.lt.s32.totalorder %s27, 1
        %s396 = scalar_select %p395, %s27, 1
        %s397 = smul.addr %s396, 8
        %s398 = scalar_lea.vmem %s0, %s397
        %p399 = pneg %p48
        %p400 = pneg %p45
        %p401 = pneg %p69
        %p402 = pneg %p66
        %p403 = pneg %p90
        %p404 = pneg %p87
        %p405 = pneg %p111
        %p406 = pneg %p108
        %p407 = pneg %p132
        %p408 = pneg %p129
        %p409 = pneg %p153
        %p410 = pneg %p150
        %p411 = pneg %p174
        %p412 = pneg %p171
        %p413 = pneg %p195
        %p414 = pneg %p192
        %p415 = pneg %p216
        %p416 = pneg %p213
        %p417 = pneg %p237
        %p418 = pneg %p234
        %p419 = pneg %p258
        %p420 = pneg %p255
        %p421 = pneg %p279
        %p422 = pneg %p276
        %p423 = pneg %p300
        %p424 = pneg %p297
        %p425 = pneg %p326
        %p426 = pneg %p323
        %s427 = sand.u32 %s313, 1
        %s428 = scalar_lea.sflag [#allocation5], %s427
        %s429 = sand.u32 %s313, 1
        %s430 = smul.addr %s429, 8
        %s431 = scalar_lea.vmem [#allocation4], %s430
        %p432 = scmp.lt.s32.totalorder %s27, 1
        %s433 = scalar_select %p432, %s27, 1
        %s434 = smul.addr %s433, 8
        %s435 = scalar_lea.vmem %s0, %s434
        %v437 = vld [vmem:[%s435] sm:$0xff]
        %v438 = vld [vmem:[%s1] sm:$0x1]
        %v439 = vld [vmem:[%s2] sm:$0x1]
        %vm440 = vcmask 261120
        %v441 = vsel %vm440, %v437, 0.0
        %442 = vadd.xlane.f32.xlu0 %v441
        %v443 = vpop.xlane.xlu0 %442
        %v444 = vrcp.pop 32.0
        %v445 = vmul.f32 32.0, %v444
        %v446 = vsub.f32 1.0, %v445
        %v447 = vmul.f32 %v444, %v446
        %v448 = vadd.f32 %v444, %v447
        %vm449 = vweird.f32 %v444
        %v450 = vsel %vm449, %v444, %v448
        %v451 = vmul.f32 %v443, %v450
        %v452 = vsub.f32 %v437, %v451
        %v453 = vmul.f32 %v452, %v452
        %v454 = vsel %vm440, %v453, 0.0
        %455 = vadd.xlane.f32.xlu0 %v454
        %v456 = vpop.xlane.xlu0 %455
        %v457 = vmul.f32 %v456, %v450
        %v458 = vadd.f32 %v457, 1e-05
        %v459 = vrsqrt.pop %v458
        %v460 = vmul.f32 %v459, %v458
        %v461 = vmul.f32 %v460, %v459
        %v462 = vmul.f32 0.5, %v461
        %v463 = vsub.f32 1.5, %v462
        %v464 = vmul.f32 %v459, %v463
        %vm465 = vweird.f32 %v458
        %vm466 = vweird.f32 %v459
        %vm467 = vmor %vm465, %vm466
        %v468 = vsel %vm467, %v459, %v464
        %v469 = vmul.f32 %v452, %v468
        %v471 = vperm.slane %v438, 0
        %v473 = vmul.f32 %v469, %v471
        %v475 = vperm.slane %v439, 0
        %v477 = vadd.f32 %v473, %v475
        %v478 = vpack.c.bf16 %v477, %v477
        %v479 = vld [vmem:[%s3] sm:$0xf]
        %v480 = vld [vmem:[%s3 + $0x4] sm:$0xf]
        %v481 = vld [vmem:[%s3 + $0x8] sm:$0xf]
        %v482 = vld [vmem:[%s3 + $0xc] sm:$0xf]
        %v483 = vld [vmem:[%s4] sm:$0x1]
        %v485 = vperm.slane %v483, 0
        %v491 = vunpack.c.l.b16 %v479
        %v492 = vunpack.c.l.b16 %v480
        %v493 = vunpack.c.l.b16 %v481
        %v494 = vunpack.c.l.b16 %v482
        %v495 = vpack.c.b16 %v492, %v491
        %v496 = vpack.c.b16 %v494, %v493
        %v500 = vsel %vm440, %v478, 0
        %502 = vmatpush.bf16.msra.mxu0 0
        %503 = vmatpush.bf16.msra.mxu0 0
        %504 = vmatpush.bf16.msra.mxu0 0
        %505 = vmatpush.bf16.msra.mxu0 0
        %506 = vmatpush.bf16.msra.mxu0 0
        %507 = vmatpush.bf16.msra.mxu0 0
        %508 = vmatpush.bf16.msra.mxu0 %v496
        %509 = vmatpush.bf16.msra.mxu0 %v495
        %510 = vmatmul.bf16.gmra.mxu0 %v500
        %v511 = vpop.f32.mrf.mxu0
        %v512 = vadd.f32 %v485, %v511
        %v513 = vpop.f32.mrf.mxu0
        %514 = vdwg.mxu0
        %v515 = vpack.c.bf16 %v512, %v512
        %vm516 = vcmask 60416
        %517 = vst.msk [vmem:[#allocation2] sm:$0xf] %vm516, %v515
        %519 = vrot.lane.b32.xlu0 %v515, 120
        %v520 = vpop.permute.xlu0 %519
        %s522 = scalar_lea.vmem [#allocation2], 4
        %523 = vst.msk [vmem:[%s522] sm:$0xf] %vm516, %v520
        %524 = vrot.lane.b32.xlu0 %v515, 112
        %v525 = vpop.permute.xlu0 %524
        %s527 = scalar_lea.vmem [#allocation2], 8
        %528 = vst.msk [vmem:[%s527] sm:$0xf] %vm516, %v525
        %529 = vrot.lane.b32.xlu0 %v515, 104
        %v530 = vpop.permute.xlu0 %529
        %s532 = scalar_lea.vmem [#allocation2], 12
        %533 = vst.msk [vmem:[%s532] sm:$0xf] %vm516, %v530
        %534 = vrot.lane.b32.xlu0 %v515, 96
        %v535 = vpop.permute.xlu0 %534
        %s537 = scalar_lea.vmem [#allocation2], 16
        %538 = vst.msk [vmem:[%s537] sm:$0xf] %vm516, %v535
        %539 = vrot.lane.b32.xlu0 %v515, 88
        %v540 = vpop.permute.xlu0 %539
        %s542 = scalar_lea.vmem [#allocation2], 20
        %543 = vst.msk [vmem:[%s542] sm:$0xf] %vm516, %v540
        %544 = vrot.lane.b32.xlu0 %v515, 80
        %v545 = vpop.permute.xlu0 %544
        %s547 = scalar_lea.vmem [#allocation2], 24
        %548 = vst.msk [vmem:[%s547] sm:$0xf] %vm516, %v545
        %549 = vrot.lane.b32.xlu0 %v515, 72
        %v550 = vpop.permute.xlu0 %549
        %s552 = scalar_lea.vmem [#allocation2], 28
        %553 = vst.msk [vmem:[%s552] sm:$0xf] %vm516, %v550
        %554 = vrot.lane.b32.xlu0 %v515, 64
        %v555 = vpop.permute.xlu0 %554
        %s557 = scalar_lea.vmem [#allocation2], 32
        %558 = vst.msk [vmem:[%s557] sm:$0xf] %vm516, %v555
        %559 = vrot.lane.b32.xlu0 %v515, 56
        %v560 = vpop.permute.xlu0 %559
        %s562 = scalar_lea.vmem [#allocation2], 36
        %563 = vst.msk [vmem:[%s562] sm:$0xf] %vm516, %v560
        %564 = vrot.lane.b32.xlu0 %v515, 48
        %v565 = vpop.permute.xlu0 %564
        %s567 = scalar_lea.vmem [#allocation2], 40
        %568 = vst.msk [vmem:[%s567] sm:$0xf] %vm516, %v565
        %569 = vrot.lane.b32.xlu0 %v515, 40
        %v570 = vpop.permute.xlu0 %569
        %s572 = scalar_lea.vmem [#allocation2], 44
        %573 = vst.msk [vmem:[%s572] sm:$0xf] %vm516, %v570
        %v574 = vlaneseq
        %v575 = vshrl.u32 %v574, 7
        %v576 = vlaneseq
        %v577 = vand.u32 %v576, 127
        %vm578 = vcmp.le.s32.totalorder %v577, %v575
        %v579 = vsel %vm578, 0.0, -1e+30
        %580 = vst.msk [vmem:[#allocation3] sm:$0xff] %vm440, 0.0
        loop: start=0, step=1, limit=4
        $region73: #{tpu_custom_call.1} parent=71 // loop_pre_header
          _
        $region74: #{tpu_custom_call.1} parent=71 // loop_header
          %s582 = sphi 0, %s586
          %p583 = scmp.ge.s32.totalorder %s582, 4
        $region75: #{tpu_custom_call.1} parent=71 // loop_header_branch
          %585 = sbr.rel (%p583) target = $region79
        $region76: #{tpu_custom_call.1} parent=71 // loop_body
          %s587 = smul.addr %s582, 4
          %s588 = scalar_lea.vmem [#allocation2], %s587
          %v589 = vld [vmem:[%s588] sm:$0xf]
          %s590 = sadd.s32 %s582, 4
          %s591 = smul.addr %s590, 4
          %s592 = scalar_lea.vmem [#allocation2], %s591
          %v593 = vld [vmem:[%s592] sm:$0xf]
          %s594 = sadd.s32 %s582, 8
          %s595 = smul.addr %s594, 4
          %s596 = scalar_lea.vmem [#allocation2], %s595
          %v597 = vld [vmem:[%s596] sm:$0xf]
          %vm598 = vcmask 64512
          %v600 = vsel %vm598, %v589, 0
          %v603 = vsel %vm598, %v593, 0
          %605 = vmatpush.bf16.xpose.msra.mxu0 0
          %606 = vmatpush.bf16.xpose.msra.mxu0 0
          %607 = vmatpush.bf16.xpose.msra.mxu0 0
          %608 = vmatpush.bf16.xpose.msra.mxu0 0
          %609 = vmatpush.bf16.xpose.msra.mxu0 0
          %610 = vmatpush.bf16.xpose.msra.mxu0 0
          %611 = vmatpush.bf16.xpose.msra.mxu0 0
          %612 = vmatpush.bf16.xpose.msra.mxu0 %v603
          %613 = vmatmul.bf16.gmra.mxu0 %v600
          %v614 = vpop.f32.mrf.mxu0
          %v615 = vadd.f32 0.0, %v614
          %v616 = vpop.f32.mrf.mxu0
          %617 = vdwg.mxu0
          %v618 = vmul.f32 %v615, 0.35355338
          %v619 = vadd.f32 %v618, %v579
          %v620 = vsel %vm598, %v619, -inf
          %621 = vmax.xlane.f32.xlu0 %v620
          %v622 = vpop.xlane.xlu0 %621
          %v623 = vsub.f32 %v619, %v622
          %v624 = vmul.f32 %v623, 1.442695
          %v625 = vpow.pop %v624
          %v626 = vsel %vm598, %v625, 0.0
          %627 = vadd.xlane.f32.xlu0 %v626
          %v628 = vpop.xlane.xlu0 %627
          %v629 = vrcp.pop %v628
          %v630 = vmul.f32 %v625, %v629
          %v631 = vpack.c.bf16 %v630, %v630
          %v633 = vsel %vm598, %v631, 0
          %vm635 = vcmask 1043456
          %v637 = vsel %vm635, %v597, 0
          %639 = vmatpush.bf16.msra.mxu0 0
          %640 = vmatpush.bf16.msra.mxu0 0
          %641 = vmatpush.bf16.msra.mxu0 0
          %642 = vmatpush.bf16.msra.mxu0 0
          %643 = vmatpush.bf16.msra.mxu0 0
          %644 = vmatpush.bf16.msra.mxu0 0
          %645 = vmatpush.bf16.msra.mxu0 0
          %646 = vmatpush.bf16.msra.mxu0 %v637
          %647 = vmatmul.bf16.gmra.mxu0 %v633
          %v648 = vpop.f32.mrf.mxu0
          %v649 = vadd.f32 0.0, %v648
          %v650 = vpop.f32.mrf.mxu0
          %651 = vdwg.mxu0
          %s652 = smul.u32 %s582, 8
          %s653 = sshra.s32 %s652, 3
          %s654 = sand.u32 %s652, 7
          %s655 = smul.addr %s653, 4
          %s656 = scalar_lea.vmem %s5, %s655
          %v657 = vld [vmem:[%s656] sm:$0xf]
          %v658 = vld [vmem:[#allocation3] sm:$0xff]
          %v659 = vpack.c.bf16 %v649, %v649
          %v661 = vsel %vm598, %v659, 0
          %v664 = vsel %vm635, %v657, 0
          %666 = vmatpush.bf16.msra.mxu0 0
          %667 = vmatpush.bf16.msra.mxu0 0
          %668 = vmatpush.bf16.msra.mxu0 0
          %669 = vmatpush.bf16.msra.mxu0 0
          %670 = vmatpush.bf16.msra.mxu0 0
          %671 = vmatpush.bf16.msra.mxu0 0
          %672 = vmatpush.bf16.msra.mxu0 0
          %673 = vmatpush.bf16.msra.mxu0 %v664
          %674 = vmatmul.bf16.gmra.mxu0 %v661
          %v675 = vpop.f32.mrf.mxu0
          %v676 = vadd.f32 0.0, %v675
          %v677 = vpop.f32.mrf.mxu0
          %678 = vdwg.mxu0
          %v679 = vadd.f32 %v658, %v676
          %680 = vst.msk [vmem:[#allocation3] sm:$0xff] %vm440, %v679
        $region77: #{tpu_custom_call.1} parent=71 // loop_footer
          %s586 = sadd.s32 1, %s582
        $region78: #{tpu_custom_call.1} parent=71 // loop_footer_branch
          %581 = sbr.rel target = $region74
        $region79: #{tpu_custom_call.1} parent=71 // loop_exit
          _
        %v681 = vld [vmem:[#allocation3] sm:$0xff]
        %v682 = vld [vmem:[%s6] sm:$0x1]
        %v684 = vperm.slane %v682, 0
        %v686 = vadd.f32 %v681, %v684
        %v687 = vadd.f32 %v437, %v686
        %v688 = vld [vmem:[%s7] sm:$0x1]
        %v689 = vld [vmem:[%s8] sm:$0x1]
        %v690 = vsel %vm440, %v687, 0.0
        %691 = vadd.xlane.f32.xlu0 %v690
        %v692 = vpop.xlane.xlu0 %691
        %v693 = vmul.f32 %v692, %v450
        %v694 = vsub.f32 %v687, %v693
        %v695 = vmul.f32 %v694, %v694
        %v696 = vsel %vm440, %v695, 0.0
        %697 = vadd.xlane.f32.xlu0 %v696
        %v698 = vpop.xlane.xlu0 %697
        %v699 = vmul.f32 %v698, %v450
        %v700 = vadd.f32 %v699, 1e-05
        %v701 = vrsqrt.pop %v700
        %v702 = vmul.f32 %v701, %v700
        %v703 = vmul.f32 %v702, %v701
        %v704 = vmul.f32 0.5, %v703
        %v705 = vsub.f32 1.5, %v704
        %v706 = vmul.f32 %v701, %v705
        %vm707 = vweird.f32 %v700
        %vm708 = vweird.f32 %v701
        %vm709 = vmor %vm707, %vm708
        %v710 = vsel %vm709, %v701, %v706
        %v711 = vmul.f32 %v694, %v710
        %v713 = vperm.slane %v688, 0
        %v715 = vmul.f32 %v711, %v713
        %v717 = vperm.slane %v689, 0
        %v719 = vadd.f32 %v715, %v717
        %v720 = vpack.c.bf16 %v719, %v719
        %v721 = vld [vmem:[%s9] sm:$0xf]
        %v722 = vld [vmem:[%s9 + $0x4] sm:$0xf]
        %v723 = vld [vmem:[%s9 + $0x8] sm:$0xf]
        %v724 = vld [vmem:[%s9 + $0xc] sm:$0xf]
        %v725 = vld [vmem:[%s10] sm:$0x1]
        %v727 = vperm.slane %v725, 0
        %v733 = vunpack.c.l.b16 %v721
        %v734 = vunpack.c.l.b16 %v722
        %v735 = vunpack.c.l.b16 %v723
        %v736 = vunpack.c.l.b16 %v724
        %v737 = vpack.c.b16 %v734, %v733
        %v738 = vpack.c.b16 %v736, %v735
        %v742 = vsel %vm440, %v720, 0
        %744 = vmatpush.bf16.msra.mxu0 0
        %745 = vmatpush.bf16.msra.mxu0 0
        %746 = vmatpush.bf16.msra.mxu0 0
        %747 = vmatpush.bf16.msra.mxu0 0
        %748 = vmatpush.bf16.msra.mxu0 0
        %749 = vmatpush.bf16.msra.mxu0 0
        %750 = vmatpush.bf16.msra.mxu0 %v738
        %751 = vmatpush.bf16.msra.mxu0 %v737
        %752 = vmatmul.bf16.gmra.mxu0 %v742
        %v753 = vpop.f32.mrf.mxu0
        %v754 = vadd.f32 %v727, %v753
        %v755 = vpop.f32.mrf.mxu0
        %756 = vdwg.mxu0
        %v757 = vmul.f32 %v754, 0.5
        %v758 = vmul.f32 %v754, 0.044715
        %v759 = vmul.f32 %v758, %v754
        %v760 = vmul.f32 %v759, %v754
        %v761 = vadd.f32 %v754, %v760
        %v762 = vmul.f32 %v761, 0.7978846
        %v763 = vtanh.pop %v762
        %v764 = vadd.f32 %v763, 1.0
        %v765 = vmul.f32 %v757, %v764
        %v766 = vpack.c.bf16 %v765, %v765
        %v767 = vld [vmem:[%s11] sm:$0xf]
        %v768 = vld [vmem:[%s11 + $0x4] sm:$0xf]
        %v769 = vld [vmem:[%s11 + $0x8] sm:$0xf]
        %v770 = vld [vmem:[%s11 + $0xc] sm:$0xf]
        %v771 = vld [vmem:[%s11 + $0x10] sm:$0xf]
        %v772 = vld [vmem:[%s11 + $0x14] sm:$0xf]
        %v773 = vld [vmem:[%s11 + $0x18] sm:$0xf]
        %v774 = vld [vmem:[%s11 + $0x1c] sm:$0xf]
        %v775 = vld [vmem:[%s11 + $0x20] sm:$0xf]
        %v776 = vld [vmem:[%s11 + $0x24] sm:$0xf]
        %v777 = vld [vmem:[%s11 + $0x28] sm:$0xf]
        %v778 = vld [vmem:[%s11 + $0x2c] sm:$0xf]
        %v779 = vld [vmem:[%s11 + $0x30] sm:$0xf]
        %v780 = vld [vmem:[%s11 + $0x34] sm:$0xf]
        %v781 = vld [vmem:[%s11 + $0x38] sm:$0xf]
        %v782 = vld [vmem:[%s11 + $0x3c] sm:$0xf]
        %v783 = vld [vmem:[%s12] sm:$0x1]
        %v785 = vperm.slane %v783, 0
        %v803 = vunpack.c.l.b16 %v767
        %v804 = vunpack.c.l.b16 %v768
        %v805 = vunpack.c.l.b16 %v769
        %v806 = vunpack.c.l.b16 %v770
        %v807 = vunpack.c.l.b16 %v771
        %v808 = vunpack.c.l.b16 %v772
        %v809 = vunpack.c.l.b16 %v773
        %v810 = vunpack.c.l.b16 %v774
        %v811 = vunpack.c.l.b16 %v775
        %v812 = vunpack.c.l.b16 %v776
        %v813 = vunpack.c.l.b16 %v777
        %v814 = vunpack.c.l.b16 %v778
        %v815 = vunpack.c.l.b16 %v779
        %v816 = vunpack.c.l.b16 %v780
        %v817 = vunpack.c.l.b16 %v781
        %v818 = vunpack.c.l.b16 %v782
        %v819 = vpack.c.b16 %v804, %v803
        %v820 = vpack.c.b16 %v806, %v805
        %v821 = vpack.c.b16 %v808, %v807
        %v822 = vpack.c.b16 %v810, %v809
        %v823 = vpack.c.b16 %v812, %v811
        %v824 = vpack.c.b16 %v814, %v813
        %v825 = vpack.c.b16 %v816, %v815
        %v826 = vpack.c.b16 %v818, %v817
        %835 = vmatpush.bf16.msra.mxu0 %v826
        %836 = vmatpush.bf16.msra.mxu0 %v825
        %837 = vmatpush.bf16.msra.mxu0 %v824
        %838 = vmatpush.bf16.msra.mxu0 %v823
        %839 = vmatpush.bf16.msra.mxu0 %v822
        %840 = vmatpush.bf16.msra.mxu0 %v821
        %841 = vmatpush.bf16.msra.mxu0 %v820
        %842 = vmatpush.bf16.msra.mxu0 %v819
        %843 = vmatmul.bf16.gmra.mxu0 %v766
        %v844 = vpop.f32.mrf.mxu0
        %v845 = vadd.f32 %v785, %v844
        %v846 = vpop.f32.mrf.mxu0
        %847 = vdwg.mxu0
        %v848 = vadd.f32 %v687, %v845
        %849 = vst.msk [vmem:[%s431] sm:$0xff] %vm440, %v848
        %s850 = sand.u32 %s313, 1
        %s851 = scalar_lea.sflag [#allocation5], %s850
        %s852 = sand.u32 %s313, 1
        %s853 = smul.addr %s852, 8
        %s854 = scalar_lea.vmem [#allocation4], %s853
        // Predicated region
        $region80: #{tpu_custom_call.1} parent=71 // pred_check
          %p855 = pneg %p323
        $region81: #{tpu_custom_call.1} parent=71 // pred_check_branch
          %857 = sbr.rel (%p855) target = $region83
        $region82: #{tpu_custom_call.1} parent=71 // pred_region
          %859 = vsyncadd %s851, 0
          %s860 = smul.addr %s27, 8
          %s861 = scalar_lea.hbm %s13, %s860
          %s863 = sshll.u32 %s854, 4
          %s864 = int_to_ptr.vmem [resolvable:$true] %s863
          %s865 = sshll.u32 %s861, 4
          %s866 = int_to_ptr.hbm [resolvable:$true] %s865
          %868 = dma.vmem_to_hbm [thread:$0]  %s864, 128, %s866, %s851
        $region83: #{tpu_custom_call.1} parent=71 // pred_fallthru
          _
      $region72: #{tpu_custom_call.1} parent=5 // pred_fallthru
        _
      %p869 = scmp.le.s32.totalorder 2, %s22
      // Predicated region
      $region84: #{tpu_custom_call.1} parent=5 // pred_check
        %p870 = pneg %p869
      $region85: #{tpu_custom_call.1} parent=5 // pred_check_branch
        %872 = sbr.rel (%p870) target = $region87
      $region86: #{tpu_custom_call.1} parent=5 // pred_region
        %s873 = ssub.s32 %s22, 2
        // Predicated region
        $region88: #{tpu_custom_call.1} parent=86 // pred_check
          %p874 = pneg %p329
        $region89: #{tpu_custom_call.1} parent=86 // pred_check_branch
          %876 = sbr.rel (%p874) target = $region91
        $region90: #{tpu_custom_call.1} parent=86 // pred_region
          %s877 = sand.u32 %s314, 1
          %s878 = scalar_lea.sflag [#allocation5], %s877
          %s879 = sand.u32 %s314, 1
          %s880 = smul.addr %s879, 8
          %s881 = scalar_lea.vmem [#allocation4], %s880
          %883 = dma.done %s878, 128
        $region91: #{tpu_custom_call.1} parent=86 // pred_fallthru
          _
      $region87: #{tpu_custom_call.1} parent=5 // pred_fallthru
        _
    $region6: #{tpu_custom_call.1} parent=1 // loop_footer
      %s26 = sadd.s32 1, %s22
    $region7: #{tpu_custom_call.1} parent=1 // loop_footer_branch
      %21 = sbr.rel target = $region3
    $region8: #{tpu_custom_call.1} parent=1 // loop_exit
      _
    %884 = vsyncpa [#allocation5], 1
    %s885 = scalar_lea.sflag [#allocation5], 1
    %886 = vsyncpa %s885, 1

</llo_original>
